<compile_context>
chip_gen: v7x
topology: tpu7x:2x2x1
jax: 0.10.0
libtpu: 0.0.40
codegen_flags: <defaults>
</compile_context>

<pallas_src>
import jax
import jax.numpy as jnp
from jax.experimental import pallas as pl
from jax.experimental.pallas import tpu as pltpu


def _rmsnorm_kernel(x_ref, g_ref, o_ref):
    # x_ref: (bN, C, T_HW)   g_ref: (1, C, 1)   o_ref: (bN, C, T_HW)
    x = x_ref[...].astype(jnp.float32)
    c = x.shape[1]

    # Fold gain and sqrt(C) into one small (1, C, 1) vector.
    g_scaled = g_ref[...].astype(jnp.float32) * jnp.float32(c) ** 0.5

    # L2 reduction over channels in f32 (per-lane, per-batch-row).
    sq_sum = jnp.sum(x * x, axis=1, keepdims=True)          # (bN, 1, T_HW)
    # rsqrt(max(sq, 1e-24)) == 1 / max(||x||, 1e-12) to fp tolerance
    # (matches F.normalize eps clamp) and rides the otherwise-idle EUP slot.
    inv = jax.lax.rsqrt(jnp.maximum(sq_sum, jnp.float32(1e-24)))

    o_ref[...] = ((x * inv) * g_scaled).astype(o_ref.dtype)


def _round_up(v, m):
    return -(-v // m) * m


def _round_down(v, m):
    return (v // m) * m


def rmsnorm(x, g, *, block_bytes_budget=None):
    """x: (N, C, H, W); g: (1, C, 1, 1).  Returns (N, C, H, W)."""
    n, c, h, w = x.shape
    hw = h * w

    itemsize = jnp.dtype(x.dtype).itemsize
    # Sublane packing: 8 rows for 4-byte, 16 for 2-byte, 32 for 1-byte dtypes.
    sublane = max(8, 32 // max(1, itemsize))
    c_padded = _round_up(c, sublane)

    if block_bytes_budget is None:
        block_bytes_budget = 2 * 1024 * 1024
        try:
            if "v7" in jax.devices()[0].device_kind.lower():
                # Faster HBM on v7x -> amortize per-step overhead with bigger
                # blocks; 4 buffers * 4 MiB stays well inside scoped VMEM.
                block_bytes_budget = 4 * 1024 * 1024
        except Exception:
            pass

    # ---- Lane (HW) tile: multiple of 128, clamped by the VMEM budget.
    row_bytes = c_padded * itemsize                 # bytes per lane, per batch
    t_hw_max = max(128, _round_down(block_bytes_budget // max(1, row_bytes), 128))
    if hw <= 128:
        t_hw = hw                                   # full-extent block is legal
    else:
        t_hw = min(t_hw_max, _round_up(hw, 128))
    # TODO(synk): for extremely large C where even t_hw=128 exceeds the VMEM
    # budget, add a C-tiled "arbitrary" grid axis with a VMEM accumulator.
    grid_hw = pl.cdiv(hw, t_hw)

    # ---- Batch block: as many batch rows as fit the budget (cdiv grid, no
    # divisor search -> no collapse for prime N; ragged last block is masked).
    per_n_block_bytes = c_padded * t_hw * itemsize
    bn = max(1, min(n, block_bytes_budget // max(1, per_n_block_bytes)))
    grid_n = pl.cdiv(n, bn)

    # ---- Guarantee >= 2 grid steps along a parallel axis (v7x has 2 TCs).
    if grid_n * grid_hw == 1:
        if bn > 1:
            bn = max(1, bn // 2)
            grid_n = pl.cdiv(n, bn)
        elif t_hw >= 256:
            t_hw = _round_up(t_hw // 2, 128)
            grid_hw = pl.cdiv(hw, t_hw)

    x3 = x.reshape(n, c, hw)
    g3 = g.reshape(1, c, 1)

    cost = pl.CostEstimate(
        flops=4 * n * c * hw,
        transcendentals=n * hw,
        bytes_accessed=2 * n * c * hw * itemsize + c * jnp.dtype(g.dtype).itemsize,
    )

    out = pl.pallas_call(
        _rmsnorm_kernel,
        out_shape=jax.ShapeDtypeStruct((n, c, hw), x.dtype),
        grid_spec=pltpu.PrefetchScalarGridSpec(
            num_scalar_prefetch=0,
            grid=(grid_n, grid_hw),
            in_specs=[
                pl.BlockSpec((bn, c, t_hw), lambda i, j: (i, 0, j)),
                pl.BlockSpec((1, c, 1), lambda i, j: (0, 0, 0)),
            ],
            out_specs=pl.BlockSpec((bn, c, t_hw), lambda i, j: (i, 0, j)),
        ),
        compiler_params=pltpu.CompilerParams(
            dimension_semantics=("parallel", "parallel"),
            vmem_limit_bytes=32 * 1024 * 1024,
        ),
        cost_estimate=cost,
    )(x3, g3)

    return out.reshape(n, c, h, w)


def rmsnorm_ref(x, g):
    """Pure-JAX reference matching F.normalize(x, dim=1) * g * sqrt(C)."""
    c = x.shape[1]
    norm = jnp.sqrt(jnp.sum(x.astype(jnp.float32) ** 2, axis=1, keepdims=True))
    return (x / jnp.maximum(norm, 1e-12)) * g * (c ** 0.5)


if __name__ == "__main__":
    key = jax.random.PRNGKey(0)
    N, C, H, W = 2, 4, 16, 16
    x = jax.random.normal(key, (N, C, H, W), dtype=jnp.float32)
    # Deterministic parameter init: nn.Parameter(torch.ones(1, dim, 1, 1))
    g = jnp.ones((1, C, 1, 1), dtype=jnp.float32)

    out = rmsnorm(x, g)
    out = jax.block_until_ready(out)

    ref = rmsnorm_ref(x, g)
    assert out.shape == (N, C, H, W)
    assert jnp.allclose(out, ref, atol=1e-5, rtol=1e-5)
    print("KERNEL_OK")
</pallas_src>

<mosaic_0001>
module attributes {stable_mosaic.version = 11 : i64} {
  func.func @_rmsnorm_kernel(%arg0: i32, %arg1: i32, %arg2: memref<1x4x256xf32, #tpu.memory_space<vmem>>, %arg3: memref<1x4x1xf32, #tpu.memory_space<vmem>>, %arg4: memref<1x4x256xf32, #tpu.memory_space<vmem>>) attributes {dimension_semantics = [#tpu.dimension_semantics<parallel>, #tpu.dimension_semantics<parallel>], iteration_bounds = array<i64: 2, 1>, scalar_prefetch = 0 : i64, scratch_operands = 0 : i64, tpu.core_type = #tpu.core_type<tc>, window_params = [{transform_indices = @transform_0, window_bounds = array<i64: 1, 4, 256>}, {pipeline_mode = #tpu.pipeline_mode<synchronous>, transform_indices = @transform_1, window_bounds = array<i64: 1, 4, 1>}, {transform_indices = @transform_2, window_bounds = array<i64: 1, 4, 256>}]} {
    %c0 = arith.constant 0 : index
    %c0_0 = arith.constant 0 : index
    %c0_1 = arith.constant 0 : index
    %0 = vector.load %arg2[%c0, %c0_0, %c0_1] : memref<1x4x256xf32, #tpu.memory_space<vmem>>, vector<1x4x256xf32>
    %c0_2 = arith.constant 0 : index
    %c0_3 = arith.constant 0 : index
    %c0_4 = arith.constant 0 : index
    %1 = vector.load %arg3[%c0_2, %c0_3, %c0_4] : memref<1x4x1xf32, #tpu.memory_space<vmem>>, vector<1x4x1xf32>
    %cst = arith.constant 4.000000e+00 : f32
    %cst_5 = arith.constant 5.000000e-01 : f32
    %2 = math.powf %cst, %cst_5 : f32
    %3 = vector.broadcast %2 : f32 to vector<1x4x1xf32>
    %4 = arith.mulf %1, %3 : vector<1x4x1xf32>
    %5 = arith.mulf %0, %0 : vector<1x4x256xf32>
    %cst_6 = arith.constant dense<0.000000e+00> : vector<1x256xf32>
    %6 = vector.multi_reduction <add>, %5, %cst_6 [1] : vector<1x4x256xf32> to vector<1x256xf32>
    %7 = vector.shape_cast %6 : vector<1x256xf32> to vector<1x1x256xf32>
    %cst_7 = arith.constant 1.000000e-24 : f32
    %8 = vector.broadcast %cst_7 : f32 to vector<1x1x256xf32>
    %9 = arith.maximumf %7, %8 : vector<1x1x256xf32>
    %10 = math.rsqrt %9 : vector<1x1x256xf32>
    %11 = vector.broadcast %10 : vector<1x1x256xf32> to vector<1x4x256xf32>
    %12 = arith.mulf %0, %11 : vector<1x4x256xf32>
    %13 = vector.broadcast %4 : vector<1x4x1xf32> to vector<1x4x256xf32>
    %14 = arith.mulf %12, %13 : vector<1x4x256xf32>
    %c0_8 = arith.constant 0 : index
    %c0_9 = arith.constant 0 : index
    %c0_10 = arith.constant 0 : index
    %15 = vector.load %arg4[%c0_8, %c0_9, %c0_10] : memref<1x4x256xf32, #tpu.memory_space<vmem>>, vector<1x4x256xf32>
    tpu.vector_store %arg4[%c0_8, %c0_9, %c0_10], %14 {strides = array<i32>} : memref<1x4x256xf32, #tpu.memory_space<vmem>>, vector<1x4x256xf32>,
    return
  }
  func.func @transform_0(%arg0: i32, %arg1: i32) -> (i32, i32, i32) {
    %c0_i32 = arith.constant 0 : i32
    %c0_i32_0 = arith.constant 0 : i32
    return %arg0, %c0_i32, %arg1 : i32, i32, i32
  }
  func.func @transform_1(%arg0: i32, %arg1: i32) -> (i32, i32, i32) {
    %c0_i32 = arith.constant 0 : i32
    %c0_i32_0 = arith.constant 0 : i32
    %c0_i32_1 = arith.constant 0 : i32
    %c0_i32_2 = arith.constant 0 : i32
    return %c0_i32, %c0_i32_0, %c0_i32_1 : i32, i32, i32
  }
  func.func @transform_2(%arg0: i32, %arg1: i32) -> (i32, i32, i32) {
    %c0_i32 = arith.constant 0 : i32
    %c0_i32_0 = arith.constant 0 : i32
    return %arg0, %c0_i32, %arg1 : i32, i32, i32
  }
}

</mosaic_0001>

<llo_original>
// kernel: tpu_custom_call.1
$region0: #{tpu_custom_call.1}
  #allocation0 [shape = 'u32[]', space=smem, size = 0x4, offset = 0x4, fixed_abs, tag = 'smem constant byte address 0x4 - core index']
  #allocation1 [shape = 'u32[144,128]{1,0:T(1,128)}', space=vmem, size = 0x12000, scoped, tag = 'internal scratch']
  %s0 = inlined_call_operand.hbm [shape: f32[2,4,256], index: 0, kind: input, shape index: {}]
  %s1 = inlined_call_operand.vmem [shape: f32[1,4,1], index: 1, kind: input, shape index: {}]
  %s2 = inlined_call_operand.hbm [shape: f32[2,4,256], index: 2, kind: output, shape index: {}]
  %s3 = sld [smem:[#allocation0]]
  $region45: #{tpu_custom_call.1} parent=0
    _
  %s5 = ssub.s32 1, %s3
  %s6 = scalar_select 0, %s5, %s3
  $region1: #{tpu_custom_call.1} parent=0
    #allocation2 [shape = 'u8[8192]{0}', space=vmem, size = 0x2000, scoped, tag = 'input window, operand 0']
    #allocation3 [shape = 's32[2]{0}', space=sflag, size = 0x8, scoped, tag = 'scoped memory for tpu_custom_call.1']
    #allocation4 [shape = 's32[2]{0}', space=sflag, size = 0x8, scoped, tag = 'scoped memory for tpu_custom_call.1']
    #allocation5 [shape = 'u8[8192]{0}', space=vmem, size = 0x2000, scoped, tag = 'output window, operand 0']
    %7 = vsyncpa [#allocation3], 0
    %s8 = scalar_lea.sflag [#allocation3], 1
    %9 = vsyncpa %s8, 0
    %10 = vsyncpa [#allocation4], 0
    %s11 = scalar_lea.sflag [#allocation4], 1
    %12 = vsyncpa %s11, 0
    loop: start=0, step=1, limit=4
    $region2: #{tpu_custom_call.1} parent=1 // loop_pre_header
      _
    $region3: #{tpu_custom_call.1} parent=1 // loop_header
      %s14 = sphi 0, %s18
      %p15 = scmp.ge.s32.totalorder %s14, 4
      %s21 = sphi 0, %s33
      %s22 = sphi 0, %s29
      %s23 = sphi 0, %s21
      %s24 = sphi 0, %s22
      %s25 = sphi 0, %s23
      %s26 = sphi 0, %s24
      %s38 = sphi 0, %s40
      %s41 = sphi 0, %s38
      %s42 = sphi 0, %s41
      %s58 = sphi 0, %s42
      %s62 = sphi 0, %s62
      %s64 = sphi 0, %s62
      %s65 = sphi 0, %s64
      %s79 = sphi 0, %s65
      %s87 = sphi 0, %s89
      %s90 = sphi 0, %s87
      %s91 = sphi 0, %s90
      %s107 = sphi 0, %s91
    $region4: #{tpu_custom_call.1} parent=1 // loop_header_branch
      %17 = sbr.rel (%p15) target = $region8
    $region5: #{tpu_custom_call.1} parent=1 // loop_body
      %s19 = ssub.s32 %s14, 1
      %s20 = ssub.s32 %s14, 2
      %s27 = sadd.s32 1, %s22
      %p28 = scmp.ge.s32.totalorder %s27, 1
      %s29 = scalar_select %p28, 0, %s27
      %s30 = sadd.s32 1, %s21
      %s31 = scalar_select %p28, %s30, %s21
      %p32 = scmp.ge.s32.totalorder %s31, 2
      %s33 = scalar_select %p32, 0, %s31
      %s34 = ssub.s32 %s21, %s33
      %s35 = ssub.s32 %s22, %s29
      %s36 = sor.u32 %s34, %s35
      %p37 = scmp.eq.s32.totalorder %s36, 0
      %s39 = sadd.s32 %s38, 1
      %s40 = scalar_select %p37, %s38, %s39
      %p43 = pneg %p37
      %p44 = scmp.eq.s32.totalorder %s14, 1
      %p45 = por %p43, %p44
      %p46 = scmp.ne.s32.totalorder %s38, %s41
      %p47 = scmp.eq.s32.totalorder %s14, 0
      %p48 = por %p46, %p47
      %p49 = scmp.ne.s32.totalorder %s38, %s41
      %p50 = scmp.eq.s32.totalorder %s19, 1
      %p51 = por %p49, %p50
      %p52 = scmp.ne.s32.totalorder %s41, %s42
      %p53 = scmp.eq.s32.totalorder %s19, 0
      %p54 = por %p52, %p53
      %p55 = scmp.ne.s32.totalorder %s41, %s42
      %p56 = scmp.eq.s32.totalorder %s20, 1
      %p57 = por %p55, %p56
      %p59 = scmp.ne.s32.totalorder %s42, %s58
      %p60 = scmp.eq.s32.totalorder %s20, 0
      %p61 = por %p59, %p60
      %s63 = sadd.s32 %s62, 1
      %p66 = scmp.eq.s32.totalorder %s14, 1
      %p67 = scmp.ne.s32.totalorder %s62, %s64
      %p68 = scmp.eq.s32.totalorder %s14, 0
      %p69 = por %p67, %p68
      %p70 = scmp.ne.s32.totalorder %s62, %s64
      %p71 = scmp.eq.s32.totalorder %s19, 1
      %p72 = por %p70, %p71
      %p73 = scmp.ne.s32.totalorder %s64, %s65
      %p74 = scmp.eq.s32.totalorder %s19, 0
      %p75 = por %p73, %p74
      %p76 = scmp.ne.s32.totalorder %s64, %s65
      %p77 = scmp.eq.s32.totalorder %s20, 1
      %p78 = por %p76, %p77
      %p80 = scmp.ne.s32.totalorder %s65, %s79
      %p81 = scmp.eq.s32.totalorder %s20, 0
      %p82 = por %p80, %p81
      %s83 = ssub.s32 %s21, %s33
      %s84 = ssub.s32 %s22, %s29
      %s85 = sor.u32 %s83, %s84
      %p86 = scmp.eq.s32.totalorder %s85, 0
      %s88 = sadd.s32 %s87, 1
      %s89 = scalar_select %p86, %s87, %s88
      %p92 = pneg %p86
      %p93 = scmp.eq.s32.totalorder %s14, 1
      %p94 = por %p92, %p93
      %p95 = scmp.ne.s32.totalorder %s87, %s90
      %p96 = scmp.eq.s32.totalorder %s14, 0
      %p97 = por %p95, %p96
      %p98 = scmp.ne.s32.totalorder %s87, %s90
      %p99 = scmp.eq.s32.totalorder %s19, 1
      %p100 = por %p98, %p99
      %p101 = scmp.ne.s32.totalorder %s90, %s91
      %p102 = scmp.eq.s32.totalorder %s19, 0
      %p103 = por %p101, %p102
      %p104 = scmp.ne.s32.totalorder %s90, %s91
      %p105 = scmp.eq.s32.totalorder %s20, 1
      %p106 = por %p104, %p105
      %p108 = scmp.ne.s32.totalorder %s91, %s107
      %p109 = scmp.eq.s32.totalorder %s20, 0
      %p110 = por %p108, %p109
      %p111 = scmp.le.s32.totalorder 1, %s14
      %p112 = scmp.lt.s32.totalorder %s14, 3
      %p113 = pnand %p111, %p112
      %p114 = pneg %p113
      // Predicated region
      $region9: #{tpu_custom_call.1} parent=5 // pred_check
        _
      $region10: #{tpu_custom_call.1} parent=5 // pred_check_branch
        %116 = sbr.rel (%p113) target = $region12
      $region11: #{tpu_custom_call.1} parent=5 // pred_region
        %s117 = ssub.s32 %s14, 1
        // Predicated region
        $region13: #{tpu_custom_call.1} parent=11 // pred_check
          %p118 = pneg %p75
        $region14: #{tpu_custom_call.1} parent=11 // pred_check_branch
          %120 = sbr.rel (%p118) target = $region16
        $region15: #{tpu_custom_call.1} parent=11 // pred_region
          _
        $region16: #{tpu_custom_call.1} parent=11 // pred_fallthru
          _
      $region12: #{tpu_custom_call.1} parent=5 // pred_fallthru
        _
      %p121 = scmp.lt.s32.totalorder %s14, 2
      // Predicated region
      $region17: #{tpu_custom_call.1} parent=5 // pred_check
        %p122 = pneg %p121
      $region18: #{tpu_custom_call.1} parent=5 // pred_check_branch
        %124 = sbr.rel (%p122) target = $region20
      $region19: #{tpu_custom_call.1} parent=5 // pred_region
        // Predicated region
        $region21: #{tpu_custom_call.1} parent=19 // pred_check
          %p125 = pneg %p48
        $region22: #{tpu_custom_call.1} parent=19 // pred_check_branch
          %127 = sbr.rel (%p125) target = $region24
        $region23: #{tpu_custom_call.1} parent=19 // pred_region
          %s128 = sand.u32 %s38, 1
          %s129 = scalar_lea.sflag [#allocation3], %s128
          %s130 = sand.u32 %s38, 1
          %s131 = smul.addr %s130, 8
          %s132 = scalar_lea.vmem [#allocation2], %s131
          %s133 = smul.u32 2, %s22
          %s135 = ssub.s32 128, 128
          %136 = vsyncadd %s129, %s135
          %s137 = smul.addr %s21, 2
          %s138 = sadd.s32 %s133, %s137
          %s139 = smul.addr %s138, 64
          %s140 = scalar_lea.hbm %s0, %s139
          %s142 = sshll.u32 %s132, 4
          %s143 = int_to_ptr.vmem [resolvable:$true] %s142
          %145 = dma.hbm_to_vmem [thread:$0]  %s140, 128, %s143, %s129
        $region24: #{tpu_custom_call.1} parent=19 // pred_fallthru
          _
      $region20: #{tpu_custom_call.1} parent=5 // pred_fallthru
        _
      %p146 = scmp.le.s32.totalorder 1, %s14
      %p147 = scmp.lt.s32.totalorder %s14, 3
      %p148 = pnand %p146, %p147
      %p149 = pneg %p148
      // Predicated region
      $region25: #{tpu_custom_call.1} parent=5 // pred_check
        _
      $region26: #{tpu_custom_call.1} parent=5 // pred_check_branch
        %151 = sbr.rel (%p148) target = $region28
      $region27: #{tpu_custom_call.1} parent=5 // pred_region
        %s152 = ssub.s32 %s14, 1
        %s153 = sand.u32 %s41, 1
        %s154 = scalar_lea.sflag [#allocation3], %s153
        %s155 = sand.u32 %s41, 1
        %s156 = smul.addr %s155, 8
        %s157 = scalar_lea.vmem [#allocation2], %s156
        // Predicated region
        $region29: #{tpu_custom_call.1} parent=27 // pred_check
          %p158 = pneg %p54
        $region30: #{tpu_custom_call.1} parent=27 // pred_check_branch
          %160 = sbr.rel (%p158) target = $region32
        $region31: #{tpu_custom_call.1} parent=27 // pred_region
          %161 = dma.done %s154, 128
        $region32: #{tpu_custom_call.1} parent=27 // pred_fallthru
          _
        %s162 = sand.u32 %s41, 1
        %s163 = scalar_lea.sflag [#allocation3], %s162
        %s164 = sand.u32 %s41, 1
        %s165 = smul.addr %s164, 8
        %s166 = scalar_lea.vmem [#allocation2], %s165
        %p167 = pneg %p54
        %p168 = pneg %p51
        %p169 = pneg %p75
        %p170 = pneg %p72
        %p171 = pneg %p103
        %p172 = pneg %p100
        %s173 = sand.u32 %s90, 1
        %s174 = scalar_lea.sflag [#allocation4], %s173
        %s175 = sand.u32 %s90, 1
        %s176 = smul.addr %s175, 8
        %s177 = scalar_lea.vmem [#allocation5], %s176
        %s178 = smul.u32 2, %s24
        %s179 = smul.u32 2, %s24
        %v180 = vld [vmem:[%s157] sm:$0xff]
        %v181 = vld [vmem:[%s1] sm:$0xf]
        %v182 = vmul.f32 %v181, 2.0
        %v183 = vmul.f32 %v180, %v180
        %v185 = vcombine.high %v183, %v183
        %vm187 = vcmask 1043456
        %v188 = vsel %vm187, %v183, 0.0
        %v189 = vrot.slane %v188, 4
        %v190 = vadd.f32 %v188, %v189
        %v191 = vrot.slane %v190, 2
        %v192 = vadd.f32 %v190, %v191
        %v193 = vrot.slane %v192, 1
        %v194 = vadd.f32 %v192, %v193
        %v195 = vsel %vm187, %v185, 0.0
        %v196 = vrot.slane %v195, 4
        %v197 = vadd.f32 %v195, %v196
        %v198 = vrot.slane %v197, 2
        %v199 = vadd.f32 %v197, %v198
        %v200 = vrot.slane %v199, 1
        %v201 = vadd.f32 %v199, %v200
        %v202 = vmax.f32 %v194, 1e-24
        %v203 = vmax.f32 %v201, 1e-24
        %v204 = vrsqrt.pop %v202
        %v205 = vrsqrt.pop %v203
        %v208 = vcombine.low %v204, %v205
        %v210 = vmul.f32 %v180, %v208
        %212 = vset.pattern.permute.xlu0 0
        %213 = vperm.xlu0 %212, %v182
        %v214 = vpop.permute.xlu0 %213
        %v216 = vunpack.c.l.s4 839922192
        %v217 = vunpack.c.0.s8 %v216
        %v218 = vlaneseq
        %v219 = vshrl.u32 %v218, 7
        %v220 = vsub.s32 %v217, %v219
        %v221 = vrot.slane %v214, %v220
        %v223 = vmul.f32 %v210, %v221
        %224 = vst [vmem:[%s177] sm:$0xff] %v223
        %s225 = sand.u32 %s90, 1
        %s226 = scalar_lea.sflag [#allocation4], %s225
        %s227 = sand.u32 %s90, 1
        %s228 = smul.addr %s227, 8
        %s229 = scalar_lea.vmem [#allocation5], %s228
        // Predicated region
        $region33: #{tpu_custom_call.1} parent=27 // pred_check
          %p230 = pneg %p100
        $region34: #{tpu_custom_call.1} parent=27 // pred_check_branch
          %232 = sbr.rel (%p230) target = $region36
        $region35: #{tpu_custom_call.1} parent=27 // pred_region
          %s233 = smul.u32 2, %s24
          %s235 = ssub.s32 128, 128
          %236 = vsyncadd %s226, %s235
          %s237 = smul.addr %s23, 2
          %s238 = sadd.s32 %s233, %s237
          %s239 = smul.addr %s238, 64
          %s240 = scalar_lea.hbm %s2, %s239
          %s242 = sshll.u32 %s229, 4
          %s243 = int_to_ptr.vmem [resolvable:$true] %s242
          %245 = dma.vmem_to_hbm [thread:$0]  %s243, 128, %s240, %s226
        $region36: #{tpu_custom_call.1} parent=27 // pred_fallthru
          _
      $region28: #{tpu_custom_call.1} parent=5 // pred_fallthru
        _
      %p246 = scmp.le.s32.totalorder 2, %s14
      // Predicated region
      $region37: #{tpu_custom_call.1} parent=5 // pred_check
        %p247 = pneg %p246
      $region38: #{tpu_custom_call.1} parent=5 // pred_check_branch
        %249 = sbr.rel (%p247) target = $region40
      $region39: #{tpu_custom_call.1} parent=5 // pred_region
        %s250 = ssub.s32 %s14, 2
        // Predicated region
        $region41: #{tpu_custom_call.1} parent=39 // pred_check
          %p251 = pneg %p106
        $region42: #{tpu_custom_call.1} parent=39 // pred_check_branch
          %253 = sbr.rel (%p251) target = $region44
        $region43: #{tpu_custom_call.1} parent=39 // pred_region
          %s254 = sand.u32 %s91, 1
          %s255 = scalar_lea.sflag [#allocation4], %s254
          %s256 = sand.u32 %s91, 1
          %s257 = smul.addr %s256, 8
          %s258 = scalar_lea.vmem [#allocation5], %s257
          %259 = dma.done %s255, 128
        $region44: #{tpu_custom_call.1} parent=39 // pred_fallthru
          _
      $region40: #{tpu_custom_call.1} parent=5 // pred_fallthru
        _
    $region6: #{tpu_custom_call.1} parent=1 // loop_footer
      %s18 = sadd.s32 1, %s14
    $region7: #{tpu_custom_call.1} parent=1 // loop_footer_branch
      %13 = sbr.rel target = $region3
    $region8: #{tpu_custom_call.1} parent=1 // loop_exit
      _
    %260 = vsyncpa [#allocation3], 1
    %s261 = scalar_lea.sflag [#allocation3], 1
    %262 = vsyncpa %s261, 1
    %263 = vsyncpa [#allocation4], 1
    %s264 = scalar_lea.sflag [#allocation4], 1
    %265 = vsyncpa %s264, 1

</llo_original>
